<compile_context>
chip_gen: v7x
topology: tpu7x:2x2x1
jax: 0.10.0
libtpu: 0.0.40
codegen_flags: <defaults>
</compile_context>

<pallas_src>
import math
import functools

import jax
import jax.numpy as jnp
from jax.experimental import pallas as pl
from jax.experimental.pallas import tpu as pltpu


# ----------------------------- Pallas kernel -------------------------------
def _fused_embed_kernel(pv_ref, po_ref, pm_ref,
                        wv_ref, wo_ref, wm_ref,
                        bv_ref, bo_ref, bm_ref,
                        ov_ref, oo_ref, om_ref):
    # One M row-tile per grid step; the three embeddings are done back-to-back
    # so there is a single launch and the weight slabs stay VMEM-resident.
    ov_ref[...] = (jnp.dot(pv_ref[...], wv_ref[...],
                           preferred_element_type=jnp.float32)
                   + bv_ref[...]).astype(ov_ref.dtype)
    oo_ref[...] = (jnp.dot(po_ref[...], wo_ref[...],
                           preferred_element_type=jnp.float32)
                   + bo_ref[...]).astype(oo_ref.dtype)
    om_ref[...] = (jnp.dot(pm_ref[...], wm_ref[...],
                           preferred_element_type=jnp.float32)
                   + bm_ref[...]).astype(om_ref.dtype)


def _fused_embed(pv, po, pm, wv, wo, wm, bv, bo, bm, *, tm):
    M = pv.shape[0]
    Kv, Ko, Km = pv.shape[1], po.shape[1], pm.shape[1]
    D = wv.shape[1]
    grid = (pl.cdiv(M, tm),)  # tail tile handled by Pallas partial-block masking

    cost = pl.CostEstimate(
        flops=2 * M * D * (Kv + Ko + Km),
        transcendentals=0,
        bytes_accessed=(M * (Kv + Ko + Km) * 2        # bf16 patch reads
                        + (Kv + Ko + Km) * D * 2      # bf16 weight reads (once)
                        + 3 * D * 4                   # biases
                        + 3 * M * D * 4),             # f32 output writes
    )

    def row_spec(k):
        return pl.BlockSpec((tm, k), lambda i: (i, 0))

    def resident_spec(shape):
        # grid-invariant block -> fetched once, stays in VMEM
        return pl.BlockSpec(shape, lambda i: (0, 0))

    return pl.pallas_call(
        _fused_embed_kernel,
        out_shape=(jax.ShapeDtypeStruct((M, D), jnp.float32),) * 3,
        grid=grid,
        in_specs=[
            row_spec(Kv), row_spec(Ko), row_spec(Km),
            resident_spec((Kv, D)), resident_spec((Ko, D)), resident_spec((Km, D)),
            resident_spec((1, D)), resident_spec((1, D)), resident_spec((1, D)),
        ],
        out_specs=[pl.BlockSpec((tm, D), lambda i: (i, 0))] * 3,
        compiler_params=pltpu.CompilerParams(
            # single M axis -> v7x megacore split lands on M (balanced),
            # harmless on single-TC v5e/v6e.
            dimension_semantics=("parallel",),
        ),
        cost_estimate=cost,
    )(pv, po, pm, wv, wo, wm, bv, bo, bm)


# ------------------------------ glue (JAX) ---------------------------------
def _extract_patches(x, t_patch, patch):
    # x: (N, C, T, H, W) -> (N, L, K), K = C * t_patch * patch * patch
    # Flatten order (T', H', W') matches flatten(3) + einsum('ncts->ntsc').
    N, C, T, H, W = x.shape
    Tp, Hp, Wp = T // t_patch, H // patch, W // patch
    x = x.reshape(N, C, Tp, t_patch, Hp, patch, Wp, patch)
    x = x.transpose(0, 2, 4, 6, 1, 3, 5, 7)  # (N, T', H', W', C, kt, kh, kw)
    return x.reshape(N, Tp * Hp * Wp, C * t_patch * patch * patch)


def _pick_tm(M, k_total, d_model):
    # Target ~24 MiB of double-buffered per-step VMEM (bf16 inputs, f32
    # outputs); weights are grid-invariant and negligible.  Cap at 4096 rows,
    # keep a multiple of 256 (sublane-friendly); if M fits in one tile use M
    # itself (full-dim block -> no (8,128) constraint, no tail).
    per_row = 2 * (k_total * 2 + 3 * d_model * 4)
    tm = (24 * 1024 * 1024) // max(per_row, 1)
    tm = min(4096, max(256, (tm // 256) * 256))
    return M if M <= tm else tm


def _forward(x, obs, mask, wv, wo, wm, bv, bo, bm, *, t_patch, patch, d_model):
    N = x.shape[0]

    def make_patches(inp):
        p = _extract_patches(inp, t_patch, patch)              # (N, L, K)
        # bf16 cast fuses into the transpose copy -> halves patch HBM traffic.
        return p.reshape(N * p.shape[1], p.shape[2]).astype(jnp.bfloat16)

    pv, po, pm = make_patches(x), make_patches(obs), make_patches(mask)
    M = pv.shape[0]
    tm = _pick_tm(M, pv.shape[1] + po.shape[1] + pm.shape[1], d_model)

    out_v, out_o, out_m = _fused_embed(pv, po, pm, wv, wo, wm, bv, bo, bm, tm=tm)

    L = M // N
    return (out_v.reshape(N, L, d_model),
            out_o.reshape(N, L, d_model),
            out_m.reshape(N, L, d_model))


# --------------------------- parameter init --------------------------------
def _kaiming_normal_conv3d(key, out_ch, in_ch, kt, kh, kw):
    # torch.nn.init.kaiming_normal_(mode='fan_in', nonlinearity='leaky_relu')
    fan_in = in_ch * kt * kh * kw
    neg_slope = 0.01
    gain = math.sqrt(2.0 / (1.0 + neg_slope ** 2))
    std = gain / math.sqrt(fan_in)
    return std * jax.random.normal(key, (out_ch, in_ch, kt, kh, kw), jnp.float32)


def _conv3d_default_bias(key, out_ch, in_ch, kt, kh, kw):
    # PyTorch Conv3d default bias: U(-1/sqrt(fan_in), 1/sqrt(fan_in))
    fan_in = in_ch * kt * kh * kw
    bound = 1.0 / math.sqrt(fan_in)
    return jax.random.uniform(key, (out_ch,), jnp.float32, -bound, bound)


class DataEmbedding2Pallas:
    def __init__(self, c_in, d_model, t_patch_size, patch_size, key):
        self.t_patch = t_patch_size
        self.patch = patch_size
        self.d_model = d_model
        ks = jax.random.split(key, 6)
        kt, kh, kw = t_patch_size, patch_size, patch_size

        # Raw Conv3d-layout parameters (kept for the reference check).
        self.w_val = _kaiming_normal_conv3d(ks[0], d_model, 3, kt, kh, kw)
        self.b_val = _conv3d_default_bias(ks[1], d_model, 3, kt, kh, kw)
        self.w_obs = _kaiming_normal_conv3d(ks[2], d_model, c_in, kt, kh, kw)
        self.b_obs = _conv3d_default_bias(ks[3], d_model, c_in, kt, kh, kw)
        self.w_msk = _kaiming_normal_conv3d(ks[4], d_model, c_in, kt, kh, kw)
        self.b_msk = _conv3d_default_bias(ks[5], d_model, c_in, kt, kh, kw)

        # Hoisted: pre-transposed (K, D) bf16 weight slabs + (1, D) f32 biases.
        # No K/D padding: the kernel uses full-array-dim blocks on those axes.
        def pack(w, b):
            D = w.shape[0]
            K = w.size // D
            w2d = jnp.transpose(w.reshape(D, K)).astype(jnp.bfloat16)  # (K, D)
            b2d = b.reshape(1, D).astype(jnp.float32)                  # (1, D)
            return w2d, b2d

        self.wv, self.bv = pack(self.w_val, self.b_val)
        self.wo, self.bo = pack(self.w_obs, self.b_obs)
        self.wm, self.bm = pack(self.w_msk, self.b_msk)

        self._fwd = jax.jit(
            functools.partial(
                _forward,
                t_patch=self.t_patch,
                patch=self.patch,
                d_model=self.d_model,
            )
        )

    def __call__(self, x, obs, mask):
        return self._fwd(x, obs, mask,
                         self.wv, self.wo, self.wm,
                         self.bv, self.bo, self.bm)


# -------------------------- pure-JAX reference -----------------------------
def _reference(x, weight, bias, t_patch, patch):
    # Same bf16 input/weight cast as the kernel, f32 accumulation.
    p = _extract_patches(x, t_patch, patch).astype(jnp.bfloat16)
    D = weight.shape[0]
    K = p.shape[-1]
    w = weight.reshape(D, K).astype(jnp.bfloat16)
    out = jnp.einsum("nlk,dk->nld", p, w, preferred_element_type=jnp.float32)
    return out + bias[None, None, :]


if __name__ == "__main__":
    key = jax.random.PRNGKey(0)
    k_param, k_x, k_obs, k_mask = jax.random.split(key, 4)

    # Small, consistent shapes: c_in=4, d_model=32, t_patch_size=2, patch_size=4
    N, C_IN, D_MODEL = 2, 4, 32
    T, H, W = 4, 8, 8
    T_PATCH, PATCH = 2, 4

    model = DataEmbedding2Pallas(C_IN, D_MODEL, T_PATCH, PATCH, k_param)

    x = jax.random.normal(k_x, (N, 3, T, H, W), jnp.float32)        # value input (c_in=3)
    obs = jax.random.normal(k_obs, (N, C_IN, T, H, W), jnp.float32)
    mask = (jax.random.uniform(k_mask, (N, C_IN, T, H, W)) > 0.5).astype(jnp.float32)

    tok, ob, mk = model(x, obs, mask)
    jax.block_until_ready((tok, ob, mk))

    # sanity check against a pure-JAX reference of the same (bf16-cast) math
    tok_ref = _reference(x, model.w_val, model.b_val, T_PATCH, PATCH)
    ob_ref = _reference(obs, model.w_obs, model.b_obs, T_PATCH, PATCH)
    mk_ref = _reference(mask, model.w_msk, model.b_msk, T_PATCH, PATCH)

    L = (T // T_PATCH) * (H // PATCH) * (W // PATCH)
    assert tok.shape == (N, L, D_MODEL)
    assert ob.shape == (N, L, D_MODEL)
    assert mk.shape == (N, L, D_MODEL)
    assert jnp.allclose(tok, tok_ref, atol=1e-2, rtol=1e-2)
    assert jnp.allclose(ob, ob_ref, atol=1e-2, rtol=1e-2)
    assert jnp.allclose(mk, mk_ref, atol=1e-2, rtol=1e-2)

    print("KERNEL_OK")
</pallas_src>

<mosaic_0001>
module attributes {stable_mosaic.version = 11 : i64} {
  func.func @_fused_embed_kernel(%arg0: i32, %arg1: memref<16x96xbf16, #tpu.memory_space<vmem>>, %arg2: memref<16x128xbf16, #tpu.memory_space<vmem>>, %arg3: memref<16x128xbf16, #tpu.memory_space<vmem>>, %arg4: memref<96x32xbf16, #tpu.memory_space<vmem>>, %arg5: memref<128x32xbf16, #tpu.memory_space<vmem>>, %arg6: memref<128x32xbf16, #tpu.memory_space<vmem>>, %arg7: memref<1x32xf32, #tpu.memory_space<vmem>>, %arg8: memref<1x32xf32, #tpu.memory_space<vmem>>, %arg9: memref<1x32xf32, #tpu.memory_space<vmem>>, %arg10: memref<16x32xf32, #tpu.memory_space<vmem>>, %arg11: memref<16x32xf32, #tpu.memory_space<vmem>>, %arg12: memref<16x32xf32, #tpu.memory_space<vmem>>) attributes {dimension_semantics = [#tpu.dimension_semantics<parallel>], iteration_bounds = array<i64: 1>, scalar_prefetch = 0 : i64, scratch_operands = 0 : i64, tpu.core_type = #tpu.core_type<tc>, window_params = [{transform_indices = @transform_0, window_bounds = array<i64: 16, 96>}, {transform_indices = @transform_1, window_bounds = array<i64: 16, 128>}, {transform_indices = @transform_2, window_bounds = array<i64: 16, 128>}, {pipeline_mode = #tpu.pipeline_mode<synchronous>, transform_indices = @transform_3, window_bounds = array<i64: 96, 32>}, {pipeline_mode = #tpu.pipeline_mode<synchronous>, transform_indices = @transform_4, window_bounds = array<i64: 128, 32>}, {pipeline_mode = #tpu.pipeline_mode<synchronous>, transform_indices = @transform_5, window_bounds = array<i64: 128, 32>}, {pipeline_mode = #tpu.pipeline_mode<synchronous>, transform_indices = @transform_6, window_bounds = array<i64: 1, 32>}, {pipeline_mode = #tpu.pipeline_mode<synchronous>, transform_indices = @transform_7, window_bounds = array<i64: 1, 32>}, {pipeline_mode = #tpu.pipeline_mode<synchronous>, transform_indices = @transform_8, window_bounds = array<i64: 1, 32>}, {transform_indices = @transform_9, window_bounds = array<i64: 16, 32>}, {transform_indices = @transform_10, window_bounds = array<i64: 16, 32>}, {transform_indices = @transform_11, window_bounds = array<i64: 16, 32>}]} {
    %c0 = arith.constant 0 : index
    %c0_0 = arith.constant 0 : index
    %0 = vector.load %arg1[%c0, %c0_0] : memref<16x96xbf16, #tpu.memory_space<vmem>>, vector<16x96xbf16>
    %c0_1 = arith.constant 0 : index
    %c0_2 = arith.constant 0 : index
    %1 = vector.load %arg4[%c0_1, %c0_2] : memref<96x32xbf16, #tpu.memory_space<vmem>>, vector<96x32xbf16>
    %cst = arith.constant dense<0.000000e+00> : vector<16x32xf32>
    %2 = tpu.matmul %0, %1, %cst {dimension_numbers = #tpu.dot_dimension_numbers<[1], [0], [0], [1], [0, 0, 1, 1], [], []>} : vector<16x96xbf16>, vector<96x32xbf16>, vector<16x32xf32> -> vector<16x32xf32>
    %c0_3 = arith.constant 0 : index
    %c0_4 = arith.constant 0 : index
    %3 = vector.load %arg7[%c0_3, %c0_4] : memref<1x32xf32, #tpu.memory_space<vmem>>, vector<1x32xf32>
    %4 = vector.broadcast %3 : vector<1x32xf32> to vector<16x32xf32>
    %5 = arith.addf %2, %4 : vector<16x32xf32>
    %c0_5 = arith.constant 0 : index
    %c0_6 = arith.constant 0 : index
    %6 = vector.load %arg10[%c0_5, %c0_6] : memref<16x32xf32, #tpu.memory_space<vmem>>, vector<16x32xf32>
    tpu.vector_store %arg10[%c0_5, %c0_6], %5 {strides = array<i32>} : memref<16x32xf32, #tpu.memory_space<vmem>>, vector<16x32xf32>,
    %c0_7 = arith.constant 0 : index
    %c0_8 = arith.constant 0 : index
    %7 = vector.load %arg2[%c0_7, %c0_8] : memref<16x128xbf16, #tpu.memory_space<vmem>>, vector<16x128xbf16>
    %c0_9 = arith.constant 0 : index
    %c0_10 = arith.constant 0 : index
    %8 = vector.load %arg5[%c0_9, %c0_10] : memref<128x32xbf16, #tpu.memory_space<vmem>>, vector<128x32xbf16>
    %cst_11 = arith.constant dense<0.000000e+00> : vector<16x32xf32>
    %9 = tpu.matmul %7, %8, %cst_11 {dimension_numbers = #tpu.dot_dimension_numbers<[1], [0], [0], [1], [0, 0, 1, 1], [], []>} : vector<16x128xbf16>, vector<128x32xbf16>, vector<16x32xf32> -> vector<16x32xf32>
    %c0_12 = arith.constant 0 : index
    %c0_13 = arith.constant 0 : index
    %10 = vector.load %arg8[%c0_12, %c0_13] : memref<1x32xf32, #tpu.memory_space<vmem>>, vector<1x32xf32>
    %11 = vector.broadcast %10 : vector<1x32xf32> to vector<16x32xf32>
    %12 = arith.addf %9, %11 : vector<16x32xf32>
    %c0_14 = arith.constant 0 : index
    %c0_15 = arith.constant 0 : index
    %13 = vector.load %arg11[%c0_14, %c0_15] : memref<16x32xf32, #tpu.memory_space<vmem>>, vector<16x32xf32>
    tpu.vector_store %arg11[%c0_14, %c0_15], %12 {strides = array<i32>} : memref<16x32xf32, #tpu.memory_space<vmem>>, vector<16x32xf32>,
    %c0_16 = arith.constant 0 : index
    %c0_17 = arith.constant 0 : index
    %14 = vector.load %arg3[%c0_16, %c0_17] : memref<16x128xbf16, #tpu.memory_space<vmem>>, vector<16x128xbf16>
    %c0_18 = arith.constant 0 : index
    %c0_19 = arith.constant 0 : index
    %15 = vector.load %arg6[%c0_18, %c0_19] : memref<128x32xbf16, #tpu.memory_space<vmem>>, vector<128x32xbf16>
    %cst_20 = arith.constant dense<0.000000e+00> : vector<16x32xf32>
    %16 = tpu.matmul %14, %15, %cst_20 {dimension_numbers = #tpu.dot_dimension_numbers<[1], [0], [0], [1], [0, 0, 1, 1], [], []>} : vector<16x128xbf16>, vector<128x32xbf16>, vector<16x32xf32> -> vector<16x32xf32>
    %c0_21 = arith.constant 0 : index
    %c0_22 = arith.constant 0 : index
    %17 = vector.load %arg9[%c0_21, %c0_22] : memref<1x32xf32, #tpu.memory_space<vmem>>, vector<1x32xf32>
    %18 = vector.broadcast %17 : vector<1x32xf32> to vector<16x32xf32>
    %19 = arith.addf %16, %18 : vector<16x32xf32>
    %c0_23 = arith.constant 0 : index
    %c0_24 = arith.constant 0 : index
    %20 = vector.load %arg12[%c0_23, %c0_24] : memref<16x32xf32, #tpu.memory_space<vmem>>, vector<16x32xf32>
    tpu.vector_store %arg12[%c0_23, %c0_24], %19 {strides = array<i32>} : memref<16x32xf32, #tpu.memory_space<vmem>>, vector<16x32xf32>,
    return
  }
  func.func @transform_0(%arg0: i32) -> (i32, i32) {
    %c0_i32 = arith.constant 0 : i32
    %c0_i32_0 = arith.constant 0 : i32
    return %arg0, %c0_i32 : i32, i32
  }
  func.func @transform_1(%arg0: i32) -> (i32, i32) {
    %c0_i32 = arith.constant 0 : i32
    %c0_i32_0 = arith.constant 0 : i32
    return %arg0, %c0_i32 : i32, i32
  }
  func.func @transform_2(%arg0: i32) -> (i32, i32) {
    %c0_i32 = arith.constant 0 : i32
    %c0_i32_0 = arith.constant 0 : i32
    return %arg0, %c0_i32 : i32, i32
  }
  func.func @transform_3(%arg0: i32) -> (i32, i32) {
    %c0_i32 = arith.constant 0 : i32
    %c0_i32_0 = arith.constant 0 : i32
    %c0_i32_1 = arith.constant 0 : i32
    return %c0_i32, %c0_i32_0 : i32, i32
  }
  func.func @transform_4(%arg0: i32) -> (i32, i32) {
    %c0_i32 = arith.constant 0 : i32
    %c0_i32_0 = arith.constant 0 : i32
    %c0_i32_1 = arith.constant 0 : i32
    return %c0_i32, %c0_i32_0 : i32, i32
  }
  func.func @transform_5(%arg0: i32) -> (i32, i32) {
    %c0_i32 = arith.constant 0 : i32
    %c0_i32_0 = arith.constant 0 : i32
    %c0_i32_1 = arith.constant 0 : i32
    return %c0_i32, %c0_i32_0 : i32, i32
  }
  func.func @transform_6(%arg0: i32) -> (i32, i32) {
    %c0_i32 = arith.constant 0 : i32
    %c0_i32_0 = arith.constant 0 : i32
    %c0_i32_1 = arith.constant 0 : i32
    return %c0_i32, %c0_i32_0 : i32, i32
  }
  func.func @transform_7(%arg0: i32) -> (i32, i32) {
    %c0_i32 = arith.constant 0 : i32
    %c0_i32_0 = arith.constant 0 : i32
    %c0_i32_1 = arith.constant 0 : i32
    return %c0_i32, %c0_i32_0 : i32, i32
  }
  func.func @transform_8(%arg0: i32) -> (i32, i32) {
    %c0_i32 = arith.constant 0 : i32
    %c0_i32_0 = arith.constant 0 : i32
    %c0_i32_1 = arith.constant 0 : i32
    return %c0_i32, %c0_i32_0 : i32, i32
  }
  func.func @transform_9(%arg0: i32) -> (i32, i32) {
    %c0_i32 = arith.constant 0 : i32
    %c0_i32_0 = arith.constant 0 : i32
    return %arg0, %c0_i32 : i32, i32
  }
  func.func @transform_10(%arg0: i32) -> (i32, i32) {
    %c0_i32 = arith.constant 0 : i32
    %c0_i32_0 = arith.constant 0 : i32
    return %arg0, %c0_i32 : i32, i32
  }
  func.func @transform_11(%arg0: i32) -> (i32, i32) {
    %c0_i32 = arith.constant 0 : i32
    %c0_i32_0 = arith.constant 0 : i32
    return %arg0, %c0_i32 : i32, i32
  }
}

</mosaic_0001>

<llo_original>
// kernel: _forward.1
$region0: #{_forward.1}
  #allocation0 [shape = 'u32[]', space=smem, size = 0x4, offset = 0x4, fixed_abs, tag = 'smem constant byte address 0x4 - core index']
  #allocation1 [shape = 'u32[144,128]{1,0:T(1,128)}', space=vmem, size = 0x12000, scoped, tag = 'internal scratch']
  %s0 = inlined_call_operand.vmem [shape: bf16[16,96], index: 0, kind: input, shape index: {}]
  %s1 = inlined_call_operand.vmem [shape: bf16[16,128], index: 1, kind: input, shape index: {}]
  %s2 = inlined_call_operand.vmem [shape: bf16[16,128], index: 2, kind: input, shape index: {}]
  %s3 = inlined_call_operand.vmem [shape: bf16[96,32], index: 3, kind: input, shape index: {}]
  %s4 = inlined_call_operand.vmem [shape: bf16[128,32], index: 4, kind: input, shape index: {}]
  %s5 = inlined_call_operand.vmem [shape: bf16[128,32], index: 5, kind: input, shape index: {}]
  %s6 = inlined_call_operand.vmem [shape: f32[1,32], index: 6, kind: input, shape index: {}]
  %s7 = inlined_call_operand.vmem [shape: f32[1,32], index: 7, kind: input, shape index: {}]
  %s8 = inlined_call_operand.vmem [shape: f32[1,32], index: 8, kind: input, shape index: {}]
  %s9 = inlined_call_operand.hbm [shape: f32[16,32], index: 9, kind: output, shape index: {0}]
  %s10 = inlined_call_operand.hbm [shape: f32[16,32], index: 10, kind: output, shape index: {1}]
  %s11 = inlined_call_operand.hbm [shape: f32[16,32], index: 11, kind: output, shape index: {2}]
  %12 = xla_tuple %s9, %s10, %s11
  %s13 = sld [smem:[#allocation0]]
  $region62: #{_forward.1} parent=0
    _
  %s15 = ssub.s32 1, %s13
  %s16 = scalar_select 0, %s15, %s13
  $region1: #{_forward.1} parent=0
    #allocation2 [shape = 'u8[8192]{0}', space=vmem, size = 0x2000, scoped, tag = 'output window, operand 0, single buffered']
    #allocation3 [shape = 's32[1]{0}', space=sflag, size = 0x4, scoped, tag = 'scoped memory for _forward.1']
    #allocation4 [shape = 'u8[8192]{0}', space=vmem, size = 0x2000, scoped, tag = 'output window, operand 1, single buffered']
    #allocation5 [shape = 's32[1]{0}', space=sflag, size = 0x4, scoped, tag = 'scoped memory for _forward.1']
    #allocation6 [shape = 'u8[8192]{0}', space=vmem, size = 0x2000, scoped, tag = 'output window, operand 2, single buffered']
    %17 = vsyncpa [#allocation3], 0
    %18 = vsyncpa [#allocation5], 0
    // Predicated region
    $region2: #{_forward.1} parent=1 // pred_check
      _
    $region3: #{_forward.1} parent=1 // pred_check_branch
      %20 = sbr.rel (0) target = $region5
    $region4: #{_forward.1} parent=1 // pred_region
      _
    $region5: #{_forward.1} parent=1 // pred_fallthru
      _
    // Predicated region
    $region6: #{_forward.1} parent=1 // pred_check
      _
    $region7: #{_forward.1} parent=1 // pred_check_branch
      %22 = sbr.rel (0) target = $region9
    $region8: #{_forward.1} parent=1 // pred_region
      _
    $region9: #{_forward.1} parent=1 // pred_fallthru
      _
    // Predicated region
    $region10: #{_forward.1} parent=1 // pred_check
      _
    $region11: #{_forward.1} parent=1 // pred_check_branch
      %24 = sbr.rel (0) target = $region13
    $region12: #{_forward.1} parent=1 // pred_region
      _
    $region13: #{_forward.1} parent=1 // pred_fallthru
      _
    // Predicated region
    $region14: #{_forward.1} parent=1 // pred_check
      _
    $region15: #{_forward.1} parent=1 // pred_check_branch
      %26 = sbr.rel (0) target = $region17
    $region16: #{_forward.1} parent=1 // pred_region
      _
    $region17: #{_forward.1} parent=1 // pred_fallthru
      _
    // Predicated region
    $region18: #{_forward.1} parent=1 // pred_check
      _
    $region19: #{_forward.1} parent=1 // pred_check_branch
      %28 = sbr.rel (0) target = $region21
    $region20: #{_forward.1} parent=1 // pred_region
      _
    $region21: #{_forward.1} parent=1 // pred_fallthru
      _
    // Predicated region
    $region22: #{_forward.1} parent=1 // pred_check
      _
    $region23: #{_forward.1} parent=1 // pred_check_branch
      %30 = sbr.rel (0) target = $region25
    $region24: #{_forward.1} parent=1 // pred_region
      _
    $region25: #{_forward.1} parent=1 // pred_fallthru
      _
    // Predicated region
    $region26: #{_forward.1} parent=1 // pred_check
      _
    $region27: #{_forward.1} parent=1 // pred_check_branch
      %32 = sbr.rel (0) target = $region29
    $region28: #{_forward.1} parent=1 // pred_region
      _
    $region29: #{_forward.1} parent=1 // pred_fallthru
      _
    // Predicated region
    $region30: #{_forward.1} parent=1 // pred_check
      _
    $region31: #{_forward.1} parent=1 // pred_check_branch
      %34 = sbr.rel (0) target = $region33
    $region32: #{_forward.1} parent=1 // pred_region
      _
    $region33: #{_forward.1} parent=1 // pred_fallthru
      _
    // Predicated region
    $region34: #{_forward.1} parent=1 // pred_check
      _
    $region35: #{_forward.1} parent=1 // pred_check_branch
      %36 = sbr.rel (0) target = $region37
    $region36: #{_forward.1} parent=1 // pred_region
      _
    $region37: #{_forward.1} parent=1 // pred_fallthru
      _
    %v38 = vld [vmem:[%s0] sm:$0xf]
    %v39 = vld [vmem:[%s0 + $0x4] sm:$0xf]
    %v40 = vld [vmem:[%s3] sm:$0xf]
    %v41 = vld [vmem:[%s3 + $0x4] sm:$0xf]
    %v42 = vld [vmem:[%s3 + $0x8] sm:$0xf]
    %v43 = vld [vmem:[%s3 + $0xc] sm:$0xf]
    %v44 = vld [vmem:[%s3 + $0x10] sm:$0xf]
    %v45 = vld [vmem:[%s3 + $0x14] sm:$0xf]
    %v46 = vld [vmem:[%s3 + $0x18] sm:$0xf]
    %v47 = vld [vmem:[%s3 + $0x1c] sm:$0xf]
    %v48 = vld [vmem:[%s3 + $0x20] sm:$0xf]
    %v49 = vld [vmem:[%s3 + $0x24] sm:$0xf]
    %v50 = vld [vmem:[%s3 + $0x28] sm:$0xf]
    %v51 = vld [vmem:[%s3 + $0x2c] sm:$0xf]
    %v52 = vld [vmem:[%s6] sm:$0x1]
    %v54 = vlaneseq
    %v55 = vshrl.u32 %v54, 7
    %v56 = vsub.s32 0, %v55
    %v57 = vrot.slane %v52, %v56
    %v61 = vunpack.c.l.b16 %v38
    %v62 = vunpack.c.l.b16 %v39
    %v63 = vpack.c.b16 %v62, %v61
    %v76 = vunpack.c.l.b16 %v40
    %v77 = vunpack.c.l.b16 %v41
    %v78 = vunpack.c.l.b16 %v42
    %v79 = vunpack.c.l.b16 %v43
    %v80 = vunpack.c.l.b16 %v44
    %v81 = vunpack.c.l.b16 %v45
    %v82 = vunpack.c.l.b16 %v46
    %v83 = vunpack.c.l.b16 %v47
    %v84 = vunpack.c.l.b16 %v48
    %v85 = vunpack.c.l.b16 %v49
    %v86 = vunpack.c.l.b16 %v50
    %v87 = vunpack.c.l.b16 %v51
    %v88 = vpack.c.b16 %v77, %v76
    %v89 = vpack.c.b16 %v79, %v78
    %v90 = vpack.c.b16 %v81, %v80
    %v91 = vpack.c.b16 %v83, %v82
    %v92 = vpack.c.b16 %v85, %v84
    %v93 = vpack.c.b16 %v87, %v86
    %vm100 = vcmask 785408
    %v102 = vsel %vm100, %v63, 0
    %104 = vmatprep.subr.bf16.mxu0 0
    %105 = vmatpush1.bf16.msra.mxu0 %v88
    %106 = vmatprep.subr.bf16.mxu0 0
    %107 = vmatpush1.bf16.msra.mxu0 %v89
    %108 = vmatprep.subr.bf16.mxu0 0
    %109 = vmatpush1.bf16.msra.mxu0 %v90
    %110 = vmatprep.subr.bf16.mxu0 0
    %111 = vmatpush1.bf16.msra.mxu0 %v91
    %112 = vmatprep.subr.bf16.mxu0 0
    %113 = vmatpush1.bf16.msra.mxu0 %v92
    %114 = vmatprep.subr.bf16.mxu0 0
    %115 = vmatpush1.bf16.msra.mxu0 %v93
    %116 = vmatprep.subr.bf16.mxu0 0
    %117 = vmatpush1.bf16.msra.mxu0 0
    %118 = vmatprep.subr.bf16.mxu0 0
    %119 = vmatpush1.bf16.msra.mxu0 0
    %120 = vmatprep.subr.bf16.mxu0 0
    %121 = vmatpush1.bf16.msra.mxu0 0
    %122 = vmatprep.subr.bf16.mxu0 0
    %123 = vmatpush1.bf16.msra.mxu0 0
    %124 = vmatprep.subr.bf16.mxu0 0
    %125 = vmatpush1.bf16.msra.mxu0 0
    %126 = vmatprep.subr.bf16.mxu0 0
    %127 = vmatpush1.bf16.msra.mxu0 0
    %128 = vmatprep.subr.bf16.mxu0 0
    %129 = vmatpush1.bf16.msra.mxu0 0
    %130 = vmatprep.subr.bf16.mxu0 0
    %131 = vmatpush1.bf16.msra.mxu0 0
    %132 = vmatprep.subr.bf16.mxu0 0
    %133 = vmatpush1.bf16.msra.mxu0 0
    %134 = vmatprep.subr.bf16.mxu0 0
    %135 = vmatpush1.bf16.msra.mxu0 0
    %136 = vmatprep.mubr.bf16.mxu0 0
    %137 = vmatmul.mubr.bf16.gmra.mrb[0].mxu0 %v102
    %v138 = vpop.f32.mrb[0].mxu0
    %v139 = vadd.f32 %v57, %v138
    %v140 = vpop.f32.mrb[0].mxu0
    %v141 = vpop.f32.mrb[0].mxu0
    %v142 = vadd.f32 %v57, %v141
    %v143 = vpop.f32.mrb[0].mxu0
    %144 = vdwg.mxu0
    %vm145 = vcmask 261120
    %146 = vst.msk [vmem:[#allocation2] sm:$0xff] %vm145, %v139
    %147 = vst.msk [vmem:[#allocation2 + $0x8] sm:$0xff] %vm145, %v142
    %v148 = vld [vmem:[%s1] sm:$0xf]
    %v149 = vld [vmem:[%s1 + $0x4] sm:$0xf]
    %v150 = vld [vmem:[%s4] sm:$0xf]
    %v151 = vld [vmem:[%s4 + $0x4] sm:$0xf]
    %v152 = vld [vmem:[%s4 + $0x8] sm:$0xf]
    %v153 = vld [vmem:[%s4 + $0xc] sm:$0xf]
    %v154 = vld [vmem:[%s4 + $0x10] sm:$0xf]
    %v155 = vld [vmem:[%s4 + $0x14] sm:$0xf]
    %v156 = vld [vmem:[%s4 + $0x18] sm:$0xf]
    %v157 = vld [vmem:[%s4 + $0x1c] sm:$0xf]
    %v158 = vld [vmem:[%s4 + $0x20] sm:$0xf]
    %v159 = vld [vmem:[%s4 + $0x24] sm:$0xf]
    %v160 = vld [vmem:[%s4 + $0x28] sm:$0xf]
    %v161 = vld [vmem:[%s4 + $0x2c] sm:$0xf]
    %v162 = vld [vmem:[%s4 + $0x30] sm:$0xf]
    %v163 = vld [vmem:[%s4 + $0x34] sm:$0xf]
    %v164 = vld [vmem:[%s4 + $0x38] sm:$0xf]
    %v165 = vld [vmem:[%s4 + $0x3c] sm:$0xf]
    %v166 = vld [vmem:[%s7] sm:$0x1]
    %v168 = vlaneseq
    %v169 = vshrl.u32 %v168, 7
    %v170 = vsub.s32 0, %v169
    %v171 = vrot.slane %v166, %v170
    %v175 = vunpack.c.l.b16 %v148
    %v176 = vunpack.c.l.b16 %v149
    %v177 = vpack.c.b16 %v176, %v175
    %v195 = vunpack.c.l.b16 %v150
    %v196 = vunpack.c.l.b16 %v151
    %v197 = vunpack.c.l.b16 %v152
    %v198 = vunpack.c.l.b16 %v153
    %v199 = vunpack.c.l.b16 %v154
    %v200 = vunpack.c.l.b16 %v155
    %v201 = vunpack.c.l.b16 %v156
    %v202 = vunpack.c.l.b16 %v157
    %v203 = vunpack.c.l.b16 %v158
    %v204 = vunpack.c.l.b16 %v159
    %v205 = vunpack.c.l.b16 %v160
    %v206 = vunpack.c.l.b16 %v161
    %v207 = vunpack.c.l.b16 %v162
    %v208 = vunpack.c.l.b16 %v163
    %v209 = vunpack.c.l.b16 %v164
    %v210 = vunpack.c.l.b16 %v165
    %v211 = vpack.c.b16 %v196, %v195
    %v212 = vpack.c.b16 %v198, %v197
    %v213 = vpack.c.b16 %v200, %v199
    %v214 = vpack.c.b16 %v202, %v201
    %v215 = vpack.c.b16 %v204, %v203
    %v216 = vpack.c.b16 %v206, %v205
    %v217 = vpack.c.b16 %v208, %v207
    %v218 = vpack.c.b16 %v210, %v209
    %227 = vmatprep.subr.bf16.mxu0 0
    %228 = vmatpush1.bf16.msra.mxu0 %v211
    %229 = vmatprep.subr.bf16.mxu0 0
    %230 = vmatpush1.bf16.msra.mxu0 %v212
    %231 = vmatprep.subr.bf16.mxu0 0
    %232 = vmatpush1.bf16.msra.mxu0 %v213
    %233 = vmatprep.subr.bf16.mxu0 0
    %234 = vmatpush1.bf16.msra.mxu0 %v214
    %235 = vmatprep.subr.bf16.mxu0 0
    %236 = vmatpush1.bf16.msra.mxu0 %v215
    %237 = vmatprep.subr.bf16.mxu0 0
    %238 = vmatpush1.bf16.msra.mxu0 %v216
    %239 = vmatprep.subr.bf16.mxu0 0
    %240 = vmatpush1.bf16.msra.mxu0 %v217
    %241 = vmatprep.subr.bf16.mxu0 0
    %242 = vmatpush1.bf16.msra.mxu0 %v218
    %243 = vmatprep.subr.bf16.mxu0 0
    %244 = vmatpush1.bf16.msra.mxu0 0
    %245 = vmatprep.subr.bf16.mxu0 0
    %246 = vmatpush1.bf16.msra.mxu0 0
    %247 = vmatprep.subr.bf16.mxu0 0
    %248 = vmatpush1.bf16.msra.mxu0 0
    %249 = vmatprep.subr.bf16.mxu0 0
    %250 = vmatpush1.bf16.msra.mxu0 0
    %251 = vmatprep.subr.bf16.mxu0 0
    %252 = vmatpush1.bf16.msra.mxu0 0
    %253 = vmatprep.subr.bf16.mxu0 0
    %254 = vmatpush1.bf16.msra.mxu0 0
    %255 = vmatprep.subr.bf16.mxu0 0
    %256 = vmatpush1.bf16.msra.mxu0 0
    %257 = vmatprep.subr.bf16.mxu0 0
    %258 = vmatpush1.bf16.msra.mxu0 0
    %259 = vmatprep.mubr.bf16.mxu0 0
    %260 = vmatmul.mubr.bf16.gmra.mrb[0].mxu0 %v177
    %v261 = vpop.f32.mrb[0].mxu0
    %v262 = vadd.f32 %v171, %v261
    %v263 = vpop.f32.mrb[0].mxu0
    %v264 = vpop.f32.mrb[0].mxu0
    %v265 = vadd.f32 %v171, %v264
    %v266 = vpop.f32.mrb[0].mxu0
    %267 = vdwg.mxu0
    %268 = vst.msk [vmem:[#allocation4] sm:$0xff] %vm145, %v262
    %269 = vst.msk [vmem:[#allocation4 + $0x8] sm:$0xff] %vm145, %v265
    %v270 = vld [vmem:[%s2] sm:$0xf]
    %v271 = vld [vmem:[%s2 + $0x4] sm:$0xf]
    %v272 = vld [vmem:[%s5] sm:$0xf]
    %v273 = vld [vmem:[%s5 + $0x4] sm:$0xf]
    %v274 = vld [vmem:[%s5 + $0x8] sm:$0xf]
    %v275 = vld [vmem:[%s5 + $0xc] sm:$0xf]
    %v276 = vld [vmem:[%s5 + $0x10] sm:$0xf]
    %v277 = vld [vmem:[%s5 + $0x14] sm:$0xf]
    %v278 = vld [vmem:[%s5 + $0x18] sm:$0xf]
    %v279 = vld [vmem:[%s5 + $0x1c] sm:$0xf]
    %v280 = vld [vmem:[%s5 + $0x20] sm:$0xf]
    %v281 = vld [vmem:[%s5 + $0x24] sm:$0xf]
    %v282 = vld [vmem:[%s5 + $0x28] sm:$0xf]
    %v283 = vld [vmem:[%s5 + $0x2c] sm:$0xf]
    %v284 = vld [vmem:[%s5 + $0x30] sm:$0xf]
    %v285 = vld [vmem:[%s5 + $0x34] sm:$0xf]
    %v286 = vld [vmem:[%s5 + $0x38] sm:$0xf]
    %v287 = vld [vmem:[%s5 + $0x3c] sm:$0xf]
    %v288 = vld [vmem:[%s8] sm:$0x1]
    %v290 = vlaneseq
    %v291 = vshrl.u32 %v290, 7
    %v292 = vsub.s32 0, %v291
    %v293 = vrot.slane %v288, %v292
    %v297 = vunpack.c.l.b16 %v270
    %v298 = vunpack.c.l.b16 %v271
    %v299 = vpack.c.b16 %v298, %v297
    %v317 = vunpack.c.l.b16 %v272
    %v318 = vunpack.c.l.b16 %v273
    %v319 = vunpack.c.l.b16 %v274
    %v320 = vunpack.c.l.b16 %v275
    %v321 = vunpack.c.l.b16 %v276
    %v322 = vunpack.c.l.b16 %v277
    %v323 = vunpack.c.l.b16 %v278
    %v324 = vunpack.c.l.b16 %v279
    %v325 = vunpack.c.l.b16 %v280
    %v326 = vunpack.c.l.b16 %v281
    %v327 = vunpack.c.l.b16 %v282
    %v328 = vunpack.c.l.b16 %v283
    %v329 = vunpack.c.l.b16 %v284
    %v330 = vunpack.c.l.b16 %v285
    %v331 = vunpack.c.l.b16 %v286
    %v332 = vunpack.c.l.b16 %v287
    %v333 = vpack.c.b16 %v318, %v317
    %v334 = vpack.c.b16 %v320, %v319
    %v335 = vpack.c.b16 %v322, %v321
    %v336 = vpack.c.b16 %v324, %v323
    %v337 = vpack.c.b16 %v326, %v325
    %v338 = vpack.c.b16 %v328, %v327
    %v339 = vpack.c.b16 %v330, %v329
    %v340 = vpack.c.b16 %v332, %v331
    %349 = vmatprep.subr.bf16.mxu0 0
    %350 = vmatpush1.bf16.msra.mxu0 %v333
    %351 = vmatprep.subr.bf16.mxu0 0
    %352 = vmatpush1.bf16.msra.mxu0 %v334
    %353 = vmatprep.subr.bf16.mxu0 0
    %354 = vmatpush1.bf16.msra.mxu0 %v335
    %355 = vmatprep.subr.bf16.mxu0 0
    %356 = vmatpush1.bf16.msra.mxu0 %v336
    %357 = vmatprep.subr.bf16.mxu0 0
    %358 = vmatpush1.bf16.msra.mxu0 %v337
    %359 = vmatprep.subr.bf16.mxu0 0
    %360 = vmatpush1.bf16.msra.mxu0 %v338
    %361 = vmatprep.subr.bf16.mxu0 0
    %362 = vmatpush1.bf16.msra.mxu0 %v339
    %363 = vmatprep.subr.bf16.mxu0 0
    %364 = vmatpush1.bf16.msra.mxu0 %v340
    %365 = vmatprep.subr.bf16.mxu0 0
    %366 = vmatpush1.bf16.msra.mxu0 0
    %367 = vmatprep.subr.bf16.mxu0 0
    %368 = vmatpush1.bf16.msra.mxu0 0
    %369 = vmatprep.subr.bf16.mxu0 0
    %370 = vmatpush1.bf16.msra.mxu0 0
    %371 = vmatprep.subr.bf16.mxu0 0
    %372 = vmatpush1.bf16.msra.mxu0 0
    %373 = vmatprep.subr.bf16.mxu0 0
    %374 = vmatpush1.bf16.msra.mxu0 0
    %375 = vmatprep.subr.bf16.mxu0 0
    %376 = vmatpush1.bf16.msra.mxu0 0
    %377 = vmatprep.subr.bf16.mxu0 0
    %378 = vmatpush1.bf16.msra.mxu0 0
    %379 = vmatprep.subr.bf16.mxu0 0
    %380 = vmatpush1.bf16.msra.mxu0 0
    %381 = vmatprep.mubr.bf16.mxu0 0
    %382 = vmatmul.mubr.bf16.gmra.mrb[0].mxu0 %v299
    %v383 = vpop.f32.mrb[0].mxu0
    %v384 = vadd.f32 %v293, %v383
    %v385 = vpop.f32.mrb[0].mxu0
    %v386 = vpop.f32.mrb[0].mxu0
    %v387 = vadd.f32 %v293, %v386
    %v388 = vpop.f32.mrb[0].mxu0
    %389 = vdwg.mxu0
    %390 = vst.msk [vmem:[#allocation6] sm:$0xff] %vm145, %v384
    %391 = vst.msk [vmem:[#allocation6 + $0x8] sm:$0xff] %vm145, %v387
    // Predicated region
    $region38: #{_forward.1} parent=1 // pred_check
      _
    $region39: #{_forward.1} parent=1 // pred_check_branch
      %393 = sbr.rel (0) target = $region41
    $region40: #{_forward.1} parent=1 // pred_region
      %s395 = ssub.s32 256, 256
      %396 = vsyncadd [#allocation3], %s395
      %s397 = sshll.u32 [#allocation2], 4
      %s398 = int_to_ptr.vmem [resolvable:$true] %s397
      %403 = dma.vmem_to_hbm [thread:$0]  %s398, 256, %s9, [#allocation3], 128, 128, 8
    $region41: #{_forward.1} parent=1 // pred_fallthru
      _
    // Predicated region
    $region42: #{_forward.1} parent=1 // pred_check
      _
    $region43: #{_forward.1} parent=1 // pred_check_branch
      %405 = sbr.rel (0) target = $region45
    $region44: #{_forward.1} parent=1 // pred_region
      %s407 = ssub.s32 256, 256
      %408 = vsyncadd [#allocation5], %s407
      %s409 = sshll.u32 [#allocation4], 4
      %s410 = int_to_ptr.vmem [resolvable:$true] %s409
      %415 = dma.vmem_to_hbm [thread:$0]  %s410, 256, %s10, [#allocation5], 128, 128, 8
    $region45: #{_forward.1} parent=1 // pred_fallthru
      _
    // Predicated region
    $region46: #{_forward.1} parent=1 // pred_check
      _
    $region47: #{_forward.1} parent=1 // pred_check_branch
      %417 = sbr.rel (0) target = $region49
    $region48: #{_forward.1} parent=1 // pred_region
      %s419 = ssub.s32 256, 256
      %420 = vsyncadd [#allocation5], %s419
      %s421 = sshll.u32 [#allocation6], 4
      %s422 = int_to_ptr.vmem [resolvable:$true] %s421
      %427 = dma.vmem_to_hbm [thread:$0]  %s422, 256, %s11, [#allocation5], 128, 128, 8
    $region49: #{_forward.1} parent=1 // pred_fallthru
      _
    // Predicated region
    $region50: #{_forward.1} parent=1 // pred_check
      _
    $region51: #{_forward.1} parent=1 // pred_check_branch
      %429 = sbr.rel (0) target = $region53
    $region52: #{_forward.1} parent=1 // pred_region
      %430 = dma.done [#allocation3], 256
    $region53: #{_forward.1} parent=1 // pred_fallthru
      _
    // Predicated region
    $region54: #{_forward.1} parent=1 // pred_check
      _
    $region55: #{_forward.1} parent=1 // pred_check_branch
      %432 = sbr.rel (0) target = $region57
    $region56: #{_forward.1} parent=1 // pred_region
      %433 = dma.done [#allocation5], 256
    $region57: #{_forward.1} parent=1 // pred_fallthru
      _
    // Predicated region
    $region58: #{_forward.1} parent=1 // pred_check
      _
    $region59: #{_forward.1} parent=1 // pred_check_branch
      %435 = sbr.rel (0) target = $region61
    $region60: #{_forward.1} parent=1 // pred_region
      %436 = dma.done [#allocation5], 256
    $region61: #{_forward.1} parent=1 // pred_fallthru
      _
    %437 = vsyncpa [#allocation3], 1
    %438 = vsyncpa [#allocation5], 1

</llo_original>
